<compile_context>
chip_gen: v6e
topology: v6e:2x2x1
jax: 0.10.0
libtpu: 0.0.40
codegen_flags: <defaults>
</compile_context>

<pallas_src>
import jax
import jax.numpy as jnp
from jax.experimental import pallas as pl
from jax.experimental.pallas import tpu as pltpu

_LANE = 128
_VMEM_BUDGET_BYTES = 12 * 1024 * 1024   # conservative: fits v5e's 16 MiB scoped default


def _dice_sums_kernel(x_ref, lbl_ref, inter_ref, sqx_ref, sqt_ref,
                      acc_xt, acc_xx, acc_tt):
    """Accumulate per-channel sum(x*t), sum(x*x), sum(t) over the flattened axis.

    x_ref:   (C, TL) f32 prediction tile (channels on sublanes, elements on lanes)
    lbl_ref: (1, TL) i32 class-index tile
    outputs: three (C, 1) f32 per-channel totals (written at the last grid step)
    scratch: three (C, TL) f32 lane-partial accumulators (resident across the grid)
    """
    @pl.when(pl.program_id(0) == 0)
    def _init():
        acc_xt[...] = jnp.zeros_like(acc_xt)
        acc_xx[...] = jnp.zeros_like(acc_xx)
        acc_tt[...] = jnp.zeros_like(acc_tt)

    x = x_ref[...]                                   # (C, TL) f32
    lbl = lbl_ref[...]                               # (1, TL) i32
    c_dim, tl = x.shape

    # In-kernel one-hot: t[c, j] = 1 iff label[j] == c (padding label -1 -> all zeros).
    cls = jax.lax.broadcasted_iota(jnp.int32, (c_dim, tl), 0)
    t = (cls == lbl).astype(jnp.float32)             # (C, TL)

    acc_xt[...] += x * t
    acc_xx[...] += x * x
    acc_tt[...] += t                                 # t == t*t for a binary one-hot

    @pl.when(pl.program_id(0) == pl.num_programs(0) - 1)
    def _fin():
        inter_ref[...] = jnp.sum(acc_xt[...], axis=1, keepdims=True)
        sqx_ref[...] = jnp.sum(acc_xx[...], axis=1, keepdims=True)
        sqt_ref[...] = jnp.sum(acc_tt[...], axis=1, keepdims=True)


def _pick_tile(num_ch, m):
    """Largest lane-tile (multiple of 128) whose working set stays in budget."""
    m_lane = ((m + _LANE - 1) // _LANE) * _LANE
    # double-buffered inputs (C + 1 rows) + 3 accumulators (C rows), all f32, per lane
    per_lane_bytes = 4 * (2 * (num_ch + 1) + 3 * num_ch)
    tl_max = max(_LANE, (_VMEM_BUDGET_BYTES // per_lane_bytes) // _LANE * _LANE)
    tl = min(tl_max, m_lane)
    m_pad = ((m + tl - 1) // tl) * tl
    return tl, m_pad


def pdv_loss_pow(out1, target, *, num_classes=6):
    """PDV_LOSS_pow forward.

    out1:   [N, C, *spatial] float predictions
    target: [N, 1, *spatial] (or [N, *spatial]) integer class indices
    """
    n_batch, n_ch = out1.shape[0], out1.shape[1]
    # make_one_hot(target, 6) in the reference; channel loop runs over C = out1.shape[1].
    assert n_ch == num_classes, "PDV_LOSS_pow hard-codes make_one_hot(target, 6); expect C == 6"

    x = jnp.moveaxis(out1, 1, 0).reshape(n_ch, -1).astype(jnp.float32)   # (C, M), order (N, spatial)
    lbl = target.reshape(1, -1).astype(jnp.int32)                        # (1, M), same order
    m = x.shape[1]

    tl, m_pad = _pick_tile(n_ch, m)
    if m_pad != m:
        pad = m_pad - m
        x = jnp.pad(x, ((0, 0), (0, pad)))                               # zeros contribute nothing
        lbl = jnp.pad(lbl, ((0, 0), (0, pad)), constant_values=-1)       # -1 -> one-hot of zeros

    grid = (m_pad // tl,)
    sums = pl.pallas_call(
        _dice_sums_kernel,
        out_shape=(jax.ShapeDtypeStruct((n_ch, 1), jnp.float32),) * 3,
        grid_spec=pltpu.PrefetchScalarGridSpec(
            num_scalar_prefetch=0,
            grid=grid,
            in_specs=[pl.BlockSpec((n_ch, tl), lambda i: (0, i)),
                      pl.BlockSpec((1, tl), lambda i: (0, i))],
            out_specs=(pl.BlockSpec((n_ch, 1), lambda i: (0, 0)),) * 3,
            scratch_shapes=[pltpu.VMEM((n_ch, tl), jnp.float32)] * 3,
        ),
        compiler_params=pltpu.CompilerParams(dimension_semantics=("arbitrary",)),
    )(x, lbl)

    inter = sums[0][:, 0]       # (C,) sum(x * t) per channel
    sq_x = sums[1][:, 0]        # (C,) sum(x ** 2) per channel
    sq_t = sums[2][:, 0]        # (C,) sum(t ** 2) per channel

    smooth = 1.0
    loss_c = 1.0 - (2.0 * inter + smooth) / (sq_x + sq_t + smooth)
    return jnp.sum(loss_c) / n_ch


def _pdv_ref(out1, target, num_classes=6):
    """Pure-JAX reference reproducing the PyTorch forward."""
    n_ch = out1.shape[1]
    onehot = jax.nn.one_hot(target[:, 0], num_classes, dtype=jnp.float32)   # (N, H, W, C)
    onehot = jnp.moveaxis(onehot, -1, 1)                                    # (N, C, H, W)
    smooth = 1.0
    total = 0.0
    for i in range(n_ch):
        xf = out1[:, i].reshape(-1)
        tf = onehot[:, i].reshape(-1)
        num = 2.0 * jnp.sum(xf * tf) + smooth
        den = jnp.sum(xf * xf) + jnp.sum(tf * tf) + smooth
        total = total + (1.0 - num / den)
    return total / n_ch


if __name__ == "__main__":
    key = jax.random.PRNGKey(0)
    k1, k2 = jax.random.split(key)
    N, C, H, W = 2, 6, 16, 16

    logits = jax.random.normal(k1, (N, C, H, W), dtype=jnp.float32)
    out1 = jax.nn.softmax(logits, axis=1)                                   # typical segmentation probs
    target = jax.random.randint(k2, (N, 1, H, W), 0, C, dtype=jnp.int32)    # class indices

    loss = pdv_loss_pow(out1, target)
    loss = jax.block_until_ready(loss)

    ref = _pdv_ref(out1, target)
    if not bool(jnp.allclose(loss, ref, rtol=1e-5, atol=1e-6)):
        raise AssertionError(f"mismatch: kernel={float(loss)} ref={float(ref)}")

    print("KERNEL_OK")
</pallas_src>

<mosaic_0001>
module attributes {stable_mosaic.version = 11 : i64} {
  func.func @_dice_sums_kernel(%arg0: i32, %arg1: memref<6x512xf32, #tpu.memory_space<vmem>>, %arg2: memref<1x512xi32, #tpu.memory_space<vmem>>, %arg3: memref<6x1xf32, #tpu.memory_space<vmem>>, %arg4: memref<6x1xf32, #tpu.memory_space<vmem>>, %arg5: memref<6x1xf32, #tpu.memory_space<vmem>>, %arg6: memref<6x512xf32, #tpu.memory_space<vmem>>, %arg7: memref<6x512xf32, #tpu.memory_space<vmem>>, %arg8: memref<6x512xf32, #tpu.memory_space<vmem>>) attributes {dimension_semantics = [#tpu.dimension_semantics<arbitrary>], iteration_bounds = array<i64: 1>, scalar_prefetch = 0 : i64, scratch_operands = 3 : i64, tpu.core_type = #tpu.core_type<tc>, window_params = [{transform_indices = @transform_0, window_bounds = array<i64: 6, 512>}, {transform_indices = @transform_1, window_bounds = array<i64: 1, 512>}, {pipeline_mode = #tpu.pipeline_mode<synchronous>, transform_indices = @transform_2, window_bounds = array<i64: 6, 1>}, {pipeline_mode = #tpu.pipeline_mode<synchronous>, transform_indices = @transform_3, window_bounds = array<i64: 6, 1>}, {pipeline_mode = #tpu.pipeline_mode<synchronous>, transform_indices = @transform_4, window_bounds = array<i64: 6, 1>}]} {
    %c0_i32 = arith.constant 0 : i32
    %0 = arith.cmpi eq, %arg0, %c0_i32 : i32
    %1 = arith.extui %0 : i1 to i32
    %c0_i32_0 = arith.constant 0 : i32
    %2 = arith.cmpi ne, %1, %c0_i32_0 : i32
    scf.if %2 {
      %cst = arith.constant 0.000000e+00 : f32
      %24 = vector.broadcast %cst : f32 to vector<6x512xf32>
      %c0_18 = arith.constant 0 : index
      %c0_19 = arith.constant 0 : index
      %25 = vector.load %arg6[%c0_18, %c0_19] : memref<6x512xf32, #tpu.memory_space<vmem>>, vector<6x512xf32>
      tpu.vector_store %arg6[%c0_18, %c0_19], %24 {strides = array<i32>} : memref<6x512xf32, #tpu.memory_space<vmem>>, vector<6x512xf32>,
      %cst_20 = arith.constant 0.000000e+00 : f32
      %26 = vector.broadcast %cst_20 : f32 to vector<6x512xf32>
      %c0_21 = arith.constant 0 : index
      %c0_22 = arith.constant 0 : index
      %27 = vector.load %arg7[%c0_21, %c0_22] : memref<6x512xf32, #tpu.memory_space<vmem>>, vector<6x512xf32>
      tpu.vector_store %arg7[%c0_21, %c0_22], %26 {strides = array<i32>} : memref<6x512xf32, #tpu.memory_space<vmem>>, vector<6x512xf32>,
      %cst_23 = arith.constant 0.000000e+00 : f32
      %28 = vector.broadcast %cst_23 : f32 to vector<6x512xf32>
      %c0_24 = arith.constant 0 : index
      %c0_25 = arith.constant 0 : index
      %29 = vector.load %arg8[%c0_24, %c0_25] : memref<6x512xf32, #tpu.memory_space<vmem>>, vector<6x512xf32>
      tpu.vector_store %arg8[%c0_24, %c0_25], %28 {strides = array<i32>} : memref<6x512xf32, #tpu.memory_space<vmem>>, vector<6x512xf32>,
    } else {
    }
    %c0 = arith.constant 0 : index
    %c0_1 = arith.constant 0 : index
    %3 = vector.load %arg1[%c0, %c0_1] : memref<6x512xf32, #tpu.memory_space<vmem>>, vector<6x512xf32>
    %c0_2 = arith.constant 0 : index
    %c0_3 = arith.constant 0 : index
    %4 = vector.load %arg2[%c0_2, %c0_3] : memref<1x512xi32, #tpu.memory_space<vmem>>, vector<1x512xi32>
    %5 = tpu.iota {dimensions = array<i32: 0>} : vector<6x512xi32>
    %6 = vector.broadcast %4 : vector<1x512xi32> to vector<6x512xi32>
    %7 = arith.cmpi eq, %5, %6 : vector<6x512xi32>
    %8 = arith.extui %7 : vector<6x512xi1> to vector<6x512xi32>
    %9 = arith.sitofp %8 : vector<6x512xi32> to vector<6x512xf32>
    %c0_4 = arith.constant 0 : index
    %c0_5 = arith.constant 0 : index
    %10 = vector.load %arg6[%c0_4, %c0_5] : memref<6x512xf32, #tpu.memory_space<vmem>>, vector<6x512xf32>
    %11 = arith.mulf %3, %9 : vector<6x512xf32>
    %12 = arith.addf %10, %11 : vector<6x512xf32>
    %c0_6 = arith.constant 0 : index
    %c0_7 = arith.constant 0 : index
    %13 = vector.load %arg6[%c0_6, %c0_7] : memref<6x512xf32, #tpu.memory_space<vmem>>, vector<6x512xf32>
    tpu.vector_store %arg6[%c0_6, %c0_7], %12 {strides = array<i32>} : memref<6x512xf32, #tpu.memory_space<vmem>>, vector<6x512xf32>,
    %c0_8 = arith.constant 0 : index
    %c0_9 = arith.constant 0 : index
    %14 = vector.load %arg7[%c0_8, %c0_9] : memref<6x512xf32, #tpu.memory_space<vmem>>, vector<6x512xf32>
    %15 = arith.mulf %3, %3 : vector<6x512xf32>
    %16 = arith.addf %14, %15 : vector<6x512xf32>
    %c0_10 = arith.constant 0 : index
    %c0_11 = arith.constant 0 : index
    %17 = vector.load %arg7[%c0_10, %c0_11] : memref<6x512xf32, #tpu.memory_space<vmem>>, vector<6x512xf32>
    tpu.vector_store %arg7[%c0_10, %c0_11], %16 {strides = array<i32>} : memref<6x512xf32, #tpu.memory_space<vmem>>, vector<6x512xf32>,
    %c0_12 = arith.constant 0 : index
    %c0_13 = arith.constant 0 : index
    %18 = vector.load %arg8[%c0_12, %c0_13] : memref<6x512xf32, #tpu.memory_space<vmem>>, vector<6x512xf32>
    %19 = arith.addf %18, %9 : vector<6x512xf32>
    %c0_14 = arith.constant 0 : index
    %c0_15 = arith.constant 0 : index
    %20 = vector.load %arg8[%c0_14, %c0_15] : memref<6x512xf32, #tpu.memory_space<vmem>>, vector<6x512xf32>
    tpu.vector_store %arg8[%c0_14, %c0_15], %19 {strides = array<i32>} : memref<6x512xf32, #tpu.memory_space<vmem>>, vector<6x512xf32>,
    %c0_i32_16 = arith.constant 0 : i32
    %21 = arith.cmpi eq, %arg0, %c0_i32_16 : i32
    %22 = arith.extui %21 : i1 to i32
    %c0_i32_17 = arith.constant 0 : i32
    %23 = arith.cmpi ne, %22, %c0_i32_17 : i32
    scf.if %23 {
      %c0_18 = arith.constant 0 : index
      %c0_19 = arith.constant 0 : index
      %24 = vector.load %arg6[%c0_18, %c0_19] : memref<6x512xf32, #tpu.memory_space<vmem>>, vector<6x512xf32>
      %cst = arith.constant dense<0.000000e+00> : vector<6xf32>
      %25 = vector.multi_reduction <add>, %24, %cst [1] : vector<6x512xf32> to vector<6xf32>
      %26 = vector.shape_cast %25 : vector<6xf32> to vector<6x1xf32>
      %c0_20 = arith.constant 0 : index
      %c0_21 = arith.constant 0 : index
      %27 = vector.load %arg3[%c0_20, %c0_21] : memref<6x1xf32, #tpu.memory_space<vmem>>, vector<6x1xf32>
      tpu.vector_store %arg3[%c0_20, %c0_21], %26 {strides = array<i32>} : memref<6x1xf32, #tpu.memory_space<vmem>>, vector<6x1xf32>,
      %c0_22 = arith.constant 0 : index
      %c0_23 = arith.constant 0 : index
      %28 = vector.load %arg7[%c0_22, %c0_23] : memref<6x512xf32, #tpu.memory_space<vmem>>, vector<6x512xf32>
      %cst_24 = arith.constant dense<0.000000e+00> : vector<6xf32>
      %29 = vector.multi_reduction <add>, %28, %cst_24 [1] : vector<6x512xf32> to vector<6xf32>
      %30 = vector.shape_cast %29 : vector<6xf32> to vector<6x1xf32>
      %c0_25 = arith.constant 0 : index
      %c0_26 = arith.constant 0 : index
      %31 = vector.load %arg4[%c0_25, %c0_26] : memref<6x1xf32, #tpu.memory_space<vmem>>, vector<6x1xf32>
      tpu.vector_store %arg4[%c0_25, %c0_26], %30 {strides = array<i32>} : memref<6x1xf32, #tpu.memory_space<vmem>>, vector<6x1xf32>,
      %c0_27 = arith.constant 0 : index
      %c0_28 = arith.constant 0 : index
      %32 = vector.load %arg8[%c0_27, %c0_28] : memref<6x512xf32, #tpu.memory_space<vmem>>, vector<6x512xf32>
      %cst_29 = arith.constant dense<0.000000e+00> : vector<6xf32>
      %33 = vector.multi_reduction <add>, %32, %cst_29 [1] : vector<6x512xf32> to vector<6xf32>
      %34 = vector.shape_cast %33 : vector<6xf32> to vector<6x1xf32>
      %c0_30 = arith.constant 0 : index
      %c0_31 = arith.constant 0 : index
      %35 = vector.load %arg5[%c0_30, %c0_31] : memref<6x1xf32, #tpu.memory_space<vmem>>, vector<6x1xf32>
      tpu.vector_store %arg5[%c0_30, %c0_31], %34 {strides = array<i32>} : memref<6x1xf32, #tpu.memory_space<vmem>>, vector<6x1xf32>,
    } else {
    }
    return
  }
  func.func @transform_0(%arg0: i32) -> (i32, i32) {
    %c0_i32 = arith.constant 0 : i32
    %c0_i32_0 = arith.constant 0 : i32
    return %c0_i32, %arg0 : i32, i32
  }
  func.func @transform_1(%arg0: i32) -> (i32, i32) {
    %c0_i32 = arith.constant 0 : i32
    %c0_i32_0 = arith.constant 0 : i32
    return %c0_i32, %arg0 : i32, i32
  }
  func.func @transform_2(%arg0: i32) -> (i32, i32) {
    %c0_i32 = arith.constant 0 : i32
    %c0_i32_0 = arith.constant 0 : i32
    %c0_i32_1 = arith.constant 0 : i32
    return %c0_i32, %c0_i32_0 : i32, i32
  }
  func.func @transform_3(%arg0: i32) -> (i32, i32) {
    %c0_i32 = arith.constant 0 : i32
    %c0_i32_0 = arith.constant 0 : i32
    %c0_i32_1 = arith.constant 0 : i32
    return %c0_i32, %c0_i32_0 : i32, i32
  }
  func.func @transform_4(%arg0: i32) -> (i32, i32) {
    %c0_i32 = arith.constant 0 : i32
    %c0_i32_0 = arith.constant 0 : i32
    %c0_i32_1 = arith.constant 0 : i32
    return %c0_i32, %c0_i32_0 : i32, i32
  }
}

</mosaic_0001>

<llo_original>
// kernel: tpu_custom_call.1
$region0: #{tpu_custom_call.1}
  #allocation0 [shape = 'u32[]', space=smem, size = 0x4, offset = 0x4, fixed_abs, tag = 'smem constant byte address 0x4 - core index']
  #allocation1 [shape = 'u32[144,128]{1,0:T(1,128)}', space=vmem, size = 0x12000, scoped, tag = 'internal scratch']
  #allocation2 [shape = 'f32[6,512]{1,0:T(8,128)}', space=vmem, size = 0x4000, scoped, tag = 'scratch operand']
  #allocation3 [shape = 'f32[6,512]{1,0:T(8,128)}', space=vmem, size = 0x4000, scoped, tag = 'scratch operand']
  #allocation4 [shape = 'f32[6,512]{1,0:T(8,128)}', space=vmem, size = 0x4000, scoped, tag = 'scratch operand']
  %s0 = inlined_call_operand.hbm [shape: f32[6,512], index: 0, kind: input, shape index: {}]
  %s1 = inlined_call_operand.hbm [shape: s32[1,512], index: 1, kind: input, shape index: {}]
  %s2 = inlined_call_operand.vmem [shape: f32[6,1], index: 2, kind: output, shape index: {0}]
  %s3 = inlined_call_operand.vmem [shape: f32[6,1], index: 3, kind: output, shape index: {1}]
  %s4 = inlined_call_operand.vmem [shape: f32[6,1], index: 4, kind: output, shape index: {2}]
  %5 = xla_tuple %s2, %s3, %s4
  %s6 = sld [smem:[#allocation0]]
  $region50: #{tpu_custom_call.1} parent=0
    _
  %s8 = ssub.s32 1, %s6
  %s9 = scalar_select 0, %s8, %s6
  $region1: #{tpu_custom_call.1} parent=0
    #allocation5 [shape = 'u8[16384]{0}', space=vmem, size = 0x4000, scoped, tag = 'input window, operand 0, single buffered']
    #allocation6 [shape = 's32[1]{0}', space=sflag, size = 0x4, scoped, tag = 'scoped memory for tpu_custom_call.1']
    #allocation7 [shape = 'u8[2048]{0}', space=vmem, size = 0x800, scoped, tag = 'input window, operand 1, single buffered']
    #allocation8 [shape = 's32[1]{0}', space=sflag, size = 0x4, scoped, tag = 'scoped memory for tpu_custom_call.1']
    %10 = vsyncpa [#allocation6], 0
    %11 = vsyncpa [#allocation8], 0
    // Predicated region
    $region2: #{tpu_custom_call.1} parent=1 // pred_check
      _
    $region3: #{tpu_custom_call.1} parent=1 // pred_check_branch
      %13 = sbr.rel (0) target = $region5
    $region4: #{tpu_custom_call.1} parent=1 // pred_region
      %s15 = ssub.s32 512, 512
      %16 = vsyncadd [#allocation6], %s15
      %s18 = sshll.u32 [#allocation5], 4
      %s19 = int_to_ptr.vmem [resolvable:$true] %s18
      %21 = dma.hbm_to_vmem [thread:$0]  %s0, 512, %s19, [#allocation6]
    $region5: #{tpu_custom_call.1} parent=1 // pred_fallthru
      _
    // Predicated region
    $region6: #{tpu_custom_call.1} parent=1 // pred_check
      _
    $region7: #{tpu_custom_call.1} parent=1 // pred_check_branch
      %23 = sbr.rel (0) target = $region9
    $region8: #{tpu_custom_call.1} parent=1 // pred_region
      %s25 = ssub.s32 64, 64
      %26 = vsyncadd [#allocation8], %s25
      %s28 = sshll.u32 [#allocation7], 4
      %s29 = int_to_ptr.vmem [resolvable:$true] %s28
      %31 = dma.hbm_to_vmem [thread:$0]  %s1, 64, %s29, [#allocation8]
    $region9: #{tpu_custom_call.1} parent=1 // pred_fallthru
      _
    // Predicated region
    $region10: #{tpu_custom_call.1} parent=1 // pred_check
      _
    $region11: #{tpu_custom_call.1} parent=1 // pred_check_branch
      %33 = sbr.rel (0) target = $region13
    $region12: #{tpu_custom_call.1} parent=1 // pred_region
      %34 = dma.done [#allocation6], 512
    $region13: #{tpu_custom_call.1} parent=1 // pred_fallthru
      _
    // Predicated region
    $region14: #{tpu_custom_call.1} parent=1 // pred_check
      _
    $region15: #{tpu_custom_call.1} parent=1 // pred_check_branch
      %36 = sbr.rel (0) target = $region17
    $region16: #{tpu_custom_call.1} parent=1 // pred_region
      %37 = dma.done [#allocation8], 64
    $region17: #{tpu_custom_call.1} parent=1 // pred_fallthru
      _
    %p38 = scmp.eq.s32.totalorder 0, 0
    // Predicated region
    $region18: #{tpu_custom_call.1} parent=1 // pred_check
      %p39 = pneg %p38
    $region19: #{tpu_custom_call.1} parent=1 // pred_check_branch
      %41 = sbr.rel (%p39) target = $region21
    $region20: #{tpu_custom_call.1} parent=1 // pred_region
      %42 = vst [vmem:[#allocation2] sm:$0x3f] 0.0
      %43 = vst [vmem:[#allocation2 + $0x8] sm:$0x3f] 0.0
      %44 = vst [vmem:[#allocation2 + $0x10] sm:$0x3f] 0.0
      %45 = vst [vmem:[#allocation2 + $0x18] sm:$0x3f] 0.0
      %46 = vst [vmem:[#allocation3] sm:$0x3f] 0.0
      %47 = vst [vmem:[#allocation3 + $0x8] sm:$0x3f] 0.0
      %48 = vst [vmem:[#allocation3 + $0x10] sm:$0x3f] 0.0
      %49 = vst [vmem:[#allocation3 + $0x18] sm:$0x3f] 0.0
      %50 = vst [vmem:[#allocation4] sm:$0x3f] 0.0
      %51 = vst [vmem:[#allocation4 + $0x8] sm:$0x3f] 0.0
      %52 = vst [vmem:[#allocation4 + $0x10] sm:$0x3f] 0.0
      %53 = vst [vmem:[#allocation4 + $0x18] sm:$0x3f] 0.0
    $region21: #{tpu_custom_call.1} parent=1 // pred_fallthru
      _
    %v54 = vld [vmem:[#allocation5] sm:$0x3f]
    %v55 = vld [vmem:[#allocation5 + $0x8] sm:$0x3f]
    %v56 = vld [vmem:[#allocation5 + $0x10] sm:$0x3f]
    %v57 = vld [vmem:[#allocation5 + $0x18] sm:$0x3f]
    %v58 = vld [vmem:[#allocation7] sm:$0xf]
    %v59 = vlaneseq
    %v60 = vshrl.u32 %v59, 7
    %v61 = vlaneseq
    %v62 = vshrl.u32 %v61, 7
    %v63 = vsub.s32 0, %v62
    %v64 = vrot.slane %v58, %v63
    %v65 = vlaneseq
    %v66 = vshrl.u32 %v65, 7
    %v67 = vsub.s32 1, %v66
    %v68 = vrot.slane %v58, %v67
    %v69 = vlaneseq
    %v70 = vshrl.u32 %v69, 7
    %v71 = vsub.s32 2, %v70
    %v72 = vrot.slane %v58, %v71
    %v73 = vlaneseq
    %v74 = vshrl.u32 %v73, 7
    %v75 = vsub.s32 3, %v74
    %v76 = vrot.slane %v58, %v75
    %vm77 = vcmp.eq.s32.totalorder %v60, %v64
    %vm78 = vcmp.eq.s32.totalorder %v60, %v68
    %vm79 = vcmp.eq.s32.totalorder %v60, %v72
    %vm80 = vcmp.eq.s32.totalorder %v60, %v76
    %v81 = vsel %vm77, 1, 0
    %v82 = vsel %vm78, 1, 0
    %v83 = vsel %vm79, 1, 0
    %v84 = vsel %vm80, 1, 0
    %v85 = vcvt.s32.f32 %v81
    %v86 = vcvt.s32.f32 %v82
    %v87 = vcvt.s32.f32 %v83
    %v88 = vcvt.s32.f32 %v84
    %v89 = vld [vmem:[#allocation2] sm:$0x3f]
    %v90 = vld [vmem:[#allocation2 + $0x8] sm:$0x3f]
    %v91 = vld [vmem:[#allocation2 + $0x10] sm:$0x3f]
    %v92 = vld [vmem:[#allocation2 + $0x18] sm:$0x3f]
    %v93 = vmul.f32 %v54, %v85
    %v94 = vmul.f32 %v55, %v86
    %v95 = vmul.f32 %v56, %v87
    %v96 = vmul.f32 %v57, %v88
    %v97 = vadd.f32 %v89, %v93
    %v98 = vadd.f32 %v90, %v94
    %v99 = vadd.f32 %v91, %v95
    %v100 = vadd.f32 %v92, %v96
    %101 = vst [vmem:[#allocation2] sm:$0x3f] %v97
    %102 = vst [vmem:[#allocation2 + $0x8] sm:$0x3f] %v98
    %103 = vst [vmem:[#allocation2 + $0x10] sm:$0x3f] %v99
    %104 = vst [vmem:[#allocation2 + $0x18] sm:$0x3f] %v100
    %v105 = vld [vmem:[#allocation3] sm:$0x3f]
    %v106 = vld [vmem:[#allocation3 + $0x8] sm:$0x3f]
    %v107 = vld [vmem:[#allocation3 + $0x10] sm:$0x3f]
    %v108 = vld [vmem:[#allocation3 + $0x18] sm:$0x3f]
    %v109 = vmul.f32 %v54, %v54
    %v110 = vmul.f32 %v55, %v55
    %v111 = vmul.f32 %v56, %v56
    %v112 = vmul.f32 %v57, %v57
    %v113 = vadd.f32 %v105, %v109
    %v114 = vadd.f32 %v106, %v110
    %v115 = vadd.f32 %v107, %v111
    %v116 = vadd.f32 %v108, %v112
    %117 = vst [vmem:[#allocation3] sm:$0x3f] %v113
    %118 = vst [vmem:[#allocation3 + $0x8] sm:$0x3f] %v114
    %119 = vst [vmem:[#allocation3 + $0x10] sm:$0x3f] %v115
    %120 = vst [vmem:[#allocation3 + $0x18] sm:$0x3f] %v116
    %v121 = vld [vmem:[#allocation4] sm:$0x3f]
    %v122 = vld [vmem:[#allocation4 + $0x8] sm:$0x3f]
    %v123 = vld [vmem:[#allocation4 + $0x10] sm:$0x3f]
    %v124 = vld [vmem:[#allocation4 + $0x18] sm:$0x3f]
    %v125 = vadd.f32 %v121, %v85
    %v126 = vadd.f32 %v122, %v86
    %v127 = vadd.f32 %v123, %v87
    %v128 = vadd.f32 %v124, %v88
    %129 = vst [vmem:[#allocation4] sm:$0x3f] %v125
    %130 = vst [vmem:[#allocation4 + $0x8] sm:$0x3f] %v126
    %131 = vst [vmem:[#allocation4 + $0x10] sm:$0x3f] %v127
    %132 = vst [vmem:[#allocation4 + $0x18] sm:$0x3f] %v128
    // Predicated region
    $region22: #{tpu_custom_call.1} parent=1 // pred_check
      %p133 = pneg %p38
    $region23: #{tpu_custom_call.1} parent=1 // pred_check_branch
      %135 = sbr.rel (%p133) target = $region25
    $region24: #{tpu_custom_call.1} parent=1 // pred_region
      %v136 = vld [vmem:[#allocation2] sm:$0x3f]
      %v137 = vld [vmem:[#allocation2 + $0x8] sm:$0x3f]
      %v138 = vld [vmem:[#allocation2 + $0x10] sm:$0x3f]
      %v139 = vld [vmem:[#allocation2 + $0x18] sm:$0x3f]
      %vm140 = vcmask 1045504
      %v141 = vsel %vm140, %v136, 0.0
      %v142 = vsel %vm140, %v137, 0.0
      %v143 = vadd.f32 %v141, %v142
      %v144 = vsel %vm140, %v138, 0.0
      %v145 = vadd.f32 %v143, %v144
      %v146 = vsel %vm140, %v139, 0.0
      %v147 = vadd.f32 %v145, %v146
      %148 = vadd.xlane.f32.xlu0 %v147
      %v149 = vpop.xlane.xlu0 %148
      %vm150 = vcmask 5120
      %151 = vst.msk [vmem:[%s2] sm:$0x3f] %vm150, %v149
      %v152 = vld [vmem:[#allocation3] sm:$0x3f]
      %v153 = vld [vmem:[#allocation3 + $0x8] sm:$0x3f]
      %v154 = vld [vmem:[#allocation3 + $0x10] sm:$0x3f]
      %v155 = vld [vmem:[#allocation3 + $0x18] sm:$0x3f]
      %v156 = vsel %vm140, %v152, 0.0
      %v157 = vsel %vm140, %v153, 0.0
      %v158 = vadd.f32 %v156, %v157
      %v159 = vsel %vm140, %v154, 0.0
      %v160 = vadd.f32 %v158, %v159
      %v161 = vsel %vm140, %v155, 0.0
      %v162 = vadd.f32 %v160, %v161
      %163 = vadd.xlane.f32.xlu0 %v162
      %v164 = vpop.xlane.xlu0 %163
      %165 = vst.msk [vmem:[%s3] sm:$0x3f] %vm150, %v164
      %v166 = vld [vmem:[#allocation4] sm:$0x3f]
      %v167 = vld [vmem:[#allocation4 + $0x8] sm:$0x3f]
      %v168 = vld [vmem:[#allocation4 + $0x10] sm:$0x3f]
      %v169 = vld [vmem:[#allocation4 + $0x18] sm:$0x3f]
      %v170 = vsel %vm140, %v166, 0.0
      %v171 = vsel %vm140, %v167, 0.0
      %v172 = vadd.f32 %v170, %v171
      %v173 = vsel %vm140, %v168, 0.0
      %v174 = vadd.f32 %v172, %v173
      %v175 = vsel %vm140, %v169, 0.0
      %v176 = vadd.f32 %v174, %v175
      %177 = vadd.xlane.f32.xlu0 %v176
      %v178 = vpop.xlane.xlu0 %177
      %179 = vst.msk [vmem:[%s4] sm:$0x3f] %vm150, %v178
    $region25: #{tpu_custom_call.1} parent=1 // pred_fallthru
      _
    // Predicated region
    $region26: #{tpu_custom_call.1} parent=1 // pred_check
      _
    $region27: #{tpu_custom_call.1} parent=1 // pred_check_branch
      %181 = sbr.rel (0) target = $region29
    $region28: #{tpu_custom_call.1} parent=1 // pred_region
      _
    $region29: #{tpu_custom_call.1} parent=1 // pred_fallthru
      _
    // Predicated region
    $region30: #{tpu_custom_call.1} parent=1 // pred_check
      _
    $region31: #{tpu_custom_call.1} parent=1 // pred_check_branch
      %183 = sbr.rel (0) target = $region33
    $region32: #{tpu_custom_call.1} parent=1 // pred_region
      _
    $region33: #{tpu_custom_call.1} parent=1 // pred_fallthru
      _
    // Predicated region
    $region34: #{tpu_custom_call.1} parent=1 // pred_check
      _
    $region35: #{tpu_custom_call.1} parent=1 // pred_check_branch
      %185 = sbr.rel (0) target = $region37
    $region36: #{tpu_custom_call.1} parent=1 // pred_region
      _
    $region37: #{tpu_custom_call.1} parent=1 // pred_fallthru
      _
    // Predicated region
    $region38: #{tpu_custom_call.1} parent=1 // pred_check
      _
    $region39: #{tpu_custom_call.1} parent=1 // pred_check_branch
      %187 = sbr.rel (0) target = $region41
    $region40: #{tpu_custom_call.1} parent=1 // pred_region
      _
    $region41: #{tpu_custom_call.1} parent=1 // pred_fallthru
      _
    // Predicated region
    $region42: #{tpu_custom_call.1} parent=1 // pred_check
      _
    $region43: #{tpu_custom_call.1} parent=1 // pred_check_branch
      %189 = sbr.rel (0) target = $region45
    $region44: #{tpu_custom_call.1} parent=1 // pred_region
      _
    $region45: #{tpu_custom_call.1} parent=1 // pred_fallthru
      _
    // Predicated region
    $region46: #{tpu_custom_call.1} parent=1 // pred_check
      _
    $region47: #{tpu_custom_call.1} parent=1 // pred_check_branch
      %191 = sbr.rel (0) target = $region49
    $region48: #{tpu_custom_call.1} parent=1 // pred_region
      _
    $region49: #{tpu_custom_call.1} parent=1 // pred_fallthru
      _
    %192 = vsyncpa [#allocation6], 1
    %193 = vsyncpa [#allocation8], 1

</llo_original>
